<compile_context>
chip_gen: v7x
topology: tpu7x:2x2x1
jax: 0.10.0
libtpu: 0.0.40
codegen_flags: <defaults>
</compile_context>

<pallas_src>
import math

import jax
import jax.numpy as jnp
from jax.experimental import pallas as pl
from jax.experimental.pallas import tpu as pltpu


def _semg_embed_kernel(x_ref, w_ref, pos_ref, o_ref):
    # x_ref:   (tm, G*CF)  bf16  grouped input rows (lane-dense slab)
    # w_ref:   (G*CF, G*E) bf16  block-diagonal token-projection weight (resident)
    # pos_ref: (tm, G*E)   f32   positional table + bias, pre-tiled & grouped
    # o_ref:   (tm, G*E)   f32   lane-dense output slab (G*E multiple of 128)
    tok = jnp.dot(x_ref[...], w_ref[...],
                  preferred_element_type=jnp.float32)      # MXU, f32 accumulate
    o_ref[...] = (tok + pos_ref[...]).astype(o_ref.dtype)  # VPU add in f32


def _pick_row_tile(m):
    # Memory-bound kernel: biggest clean row tile wins (0.35us/step overhead),
    # capped at 1024 rows so double-buffered tiles stay well under scoped VMEM.
    for t in (1024, 512, 256, 128, 64, 32, 16, 8):
        if t <= m and m % t == 0:
            return t
    return m  # tiny / awkward M: single full block (always legal)


def semg_embedding(x, w_tok, b_tok, pos_table, *, dropout_p=0.1, training=False):
    """
    x:         (B, S, C, F)  sEMG features
    w_tok:     (C*F, E)      token linear weight
    b_tok:     (E,)          token linear bias
    pos_table: (max_len, E)  learnable positional embedding table
    Returns:   (B, S, E)     float32
    """
    B, S, C, F = x.shape
    CF = C * F
    E = w_tok.shape[1]
    M = B * S

    if S > pos_table.shape[0]:
        raise ValueError(
            f"sequence length {S} exceeds positional table length {pos_table.shape[0]}")

    # ---- wrapper-side (XLA) prep, done once per call -----------------------
    # Fold bias into the positional slice; pre-tile over batch. The pos slab
    # read costs exactly one extra output-sized HBM read; keeping it f32
    # preserves the module's f32 add semantics.
    pos_b = pos_table[:S].astype(jnp.float32) + b_tok.astype(jnp.float32)[None, :]
    pos_full = jnp.tile(pos_b, (B, 1))                       # (M, E) f32

    # Row-group factor so the output slab's last dim is a multiple of 128 lanes.
    G = 128 // math.gcd(E, 128)
    if M % G != 0:
        G = 1                                                # fallback: plain layout
    Mg = M // G
    GCF, GE = G * CF, G * E

    # Block-diagonal weight: G copies of w_tok on the diagonal. The matmul then
    # maps (Mg, G*CF) -> (Mg, G*E), which is exactly the row-major regrouping of
    # the (M, E) result -> lane-dense stores with no in-kernel relayout.
    eye_g = jnp.eye(G, dtype=jnp.float32)
    w_big = jnp.einsum("gh,kf->gkhf", eye_g, w_tok.astype(jnp.float32))
    w_big = w_big.reshape(GCF, GE).astype(jnp.bfloat16)

    x_g = x.reshape(Mg, GCF).astype(jnp.bfloat16)            # contiguous, lane-dense
    pos_g = pos_full.reshape(Mg, GE)                         # f32

    tm = _pick_row_tile(Mg)
    grid = (Mg // tm,)

    out_g = pl.pallas_call(
        _semg_embed_kernel,
        out_shape=jax.ShapeDtypeStruct((Mg, GE), jnp.float32),
        grid_spec=pltpu.PrefetchScalarGridSpec(
            num_scalar_prefetch=0,
            grid=grid,
            in_specs=[
                pl.BlockSpec((tm, GCF), lambda i: (i, 0)),   # x slab
                pl.BlockSpec((GCF, GE), lambda i: (0, 0)),   # resident weight
                pl.BlockSpec((tm, GE), lambda i: (i, 0)),    # pos (+bias) slab
            ],
            out_specs=pl.BlockSpec((tm, GE), lambda i: (i, 0)),
        ),
        compiler_params=pltpu.CompilerParams(
            dimension_semantics=("parallel",),               # v7x: shard tiles over TCs
            vmem_limit_bytes=32 * 1024 * 1024,
        ),
    )(x_g, w_big, pos_g)

    out = out_g.reshape(B, S, E)

    # TODO(synk): training-mode stochastic dropout (pltpu.prng_seed /
    # pltpu.stateful_bernoulli) not wired in; eval-mode dropout is identity,
    # matching inference semantics of the original module.
    if training and dropout_p > 0.0:
        pass
    return out


if __name__ == "__main__":
    # Small shapes consistent with the module:
    #   sEMG channels C = 12, feature_size F = 4, embed_size E = 32,
    #   max positional length (vocab_size) = 64, batch B = 2, seq S = 8.
    B, S, C, F, E = 2, 8, 12, 4, 32
    VOCAB = 64

    key = jax.random.PRNGKey(0)
    kx, kw, kb, kp = jax.random.split(key, 4)

    x = jax.random.normal(kx, (B, S, C, F), dtype=jnp.float32)
    w_tok = (jax.random.normal(kw, (C * F, E), dtype=jnp.float32)
             * (1.0 / jnp.sqrt(C * F)))
    b_tok = jax.random.normal(kb, (E,), dtype=jnp.float32) * 0.02
    pos_table = jax.random.normal(kp, (VOCAB, E), dtype=jnp.float32) * 0.02

    out = jax.block_until_ready(semg_embedding(x, w_tok, b_tok, pos_table))

    # Reference with the same bf16 input rounding (f32 accumulation), plain XLA.
    xr = x.reshape(B * S, C * F).astype(jnp.bfloat16).astype(jnp.float32)
    wr = w_tok.astype(jnp.bfloat16).astype(jnp.float32)
    tok = jnp.dot(xr, wr, precision=jax.lax.Precision.HIGHEST).reshape(B, S, E)
    ref = tok + b_tok[None, None, :] + pos_table[:S][None]

    assert out.shape == (B, S, E)
    assert jnp.allclose(out, ref, atol=1e-4, rtol=1e-4)

    print("KERNEL_OK")
</pallas_src>

<mosaic_0001>
module attributes {stable_mosaic.version = 11 : i64} {
  func.func @_semg_embed_kernel(%arg0: i32, %arg1: memref<4x192xbf16, #tpu.memory_space<vmem>>, %arg2: memref<192x128xbf16, #tpu.memory_space<vmem>>, %arg3: memref<4x128xf32, #tpu.memory_space<vmem>>, %arg4: memref<4x128xf32, #tpu.memory_space<vmem>>) attributes {dimension_semantics = [#tpu.dimension_semantics<parallel>], iteration_bounds = array<i64: 1>, scalar_prefetch = 0 : i64, scratch_operands = 0 : i64, tpu.core_type = #tpu.core_type<tc>, window_params = [{transform_indices = @transform_0, window_bounds = array<i64: 4, 192>}, {pipeline_mode = #tpu.pipeline_mode<synchronous>, transform_indices = @transform_1, window_bounds = array<i64: 192, 128>}, {transform_indices = @transform_2, window_bounds = array<i64: 4, 128>}, {transform_indices = @transform_3, window_bounds = array<i64: 4, 128>}]} {
    %c0 = arith.constant 0 : index
    %c0_0 = arith.constant 0 : index
    %0 = vector.load %arg1[%c0, %c0_0] : memref<4x192xbf16, #tpu.memory_space<vmem>>, vector<4x192xbf16>
    %c0_1 = arith.constant 0 : index
    %c0_2 = arith.constant 0 : index
    %1 = vector.load %arg2[%c0_1, %c0_2] : memref<192x128xbf16, #tpu.memory_space<vmem>>, vector<192x128xbf16>
    %cst = arith.constant dense<0.000000e+00> : vector<4x128xf32>
    %2 = tpu.matmul %0, %1, %cst {dimension_numbers = #tpu.dot_dimension_numbers<[1], [0], [0], [1], [0, 0, 1, 1], [], []>} : vector<4x192xbf16>, vector<192x128xbf16>, vector<4x128xf32> -> vector<4x128xf32>
    %c0_3 = arith.constant 0 : index
    %c0_4 = arith.constant 0 : index
    %3 = vector.load %arg3[%c0_3, %c0_4] : memref<4x128xf32, #tpu.memory_space<vmem>>, vector<4x128xf32>
    %4 = arith.addf %2, %3 : vector<4x128xf32>
    %c0_5 = arith.constant 0 : index
    %c0_6 = arith.constant 0 : index
    %5 = vector.load %arg4[%c0_5, %c0_6] : memref<4x128xf32, #tpu.memory_space<vmem>>, vector<4x128xf32>
    tpu.vector_store %arg4[%c0_5, %c0_6], %4 {strides = array<i32>} : memref<4x128xf32, #tpu.memory_space<vmem>>, vector<4x128xf32>,
    return
  }
  func.func @transform_0(%arg0: i32) -> (i32, i32) {
    %c0_i32 = arith.constant 0 : i32
    %c0_i32_0 = arith.constant 0 : i32
    return %arg0, %c0_i32 : i32, i32
  }
  func.func @transform_1(%arg0: i32) -> (i32, i32) {
    %c0_i32 = arith.constant 0 : i32
    %c0_i32_0 = arith.constant 0 : i32
    %c0_i32_1 = arith.constant 0 : i32
    return %c0_i32, %c0_i32_0 : i32, i32
  }
  func.func @transform_2(%arg0: i32) -> (i32, i32) {
    %c0_i32 = arith.constant 0 : i32
    %c0_i32_0 = arith.constant 0 : i32
    return %arg0, %c0_i32 : i32, i32
  }
  func.func @transform_3(%arg0: i32) -> (i32, i32) {
    %c0_i32 = arith.constant 0 : i32
    %c0_i32_0 = arith.constant 0 : i32
    return %arg0, %c0_i32 : i32, i32
  }
}

</mosaic_0001>

<llo_original>
// kernel: tpu_custom_call.1
$region0: #{tpu_custom_call.1}
  #allocation0 [shape = 'u32[]', space=smem, size = 0x4, offset = 0x4, fixed_abs, tag = 'smem constant byte address 0x4 - core index']
  #allocation1 [shape = 'u32[144,128]{1,0:T(1,128)}', space=vmem, size = 0x12000, scoped, tag = 'internal scratch']
  %s0 = inlined_call_operand.hbm [shape: bf16[4,192], index: 0, kind: input, shape index: {}]
  %s1 = inlined_call_operand.hbm [shape: bf16[192,128], index: 1, kind: input, shape index: {}]
  %s2 = inlined_call_operand.vmem [shape: f32[4,128], index: 2, kind: input, shape index: {}]
  %s3 = inlined_call_operand.hbm [shape: f32[4,128], index: 3, kind: output, shape index: {}]
  %s4 = sld [smem:[#allocation0]]
  $region30: #{tpu_custom_call.1} parent=0
    _
  %s6 = ssub.s32 1, %s4
  %s7 = scalar_select 0, %s6, %s4
  $region1: #{tpu_custom_call.1} parent=0
    #allocation2 [shape = 'u8[2048]{0}', space=vmem, size = 0x800, scoped, tag = 'input window, operand 0, single buffered']
    #allocation3 [shape = 's32[1]{0}', space=sflag, size = 0x4, scoped, tag = 'scoped memory for tpu_custom_call.1']
    #allocation4 [shape = 's32[1]{0}', space=sflag, size = 0x4, scoped, tag = 'scoped memory for tpu_custom_call.1']
    #allocation5 [shape = 'u8[49152]{0}', space=vmem, size = 0xc000, scoped, tag = 'input window, operand 1, single buffered']
    #allocation6 [shape = 's32[1]{0}', space=sflag, size = 0x4, scoped, tag = 'scoped memory for tpu_custom_call.1']
    #allocation7 [shape = 'u8[2048]{0}', space=vmem, size = 0x800, scoped, tag = 'output window, operand 0, single buffered']
    %8 = vsyncpa [#allocation3], 0
    %9 = vsyncpa [#allocation6], 0
    %10 = vsyncpa [#allocation4], 0
    // Predicated region
    $region2: #{tpu_custom_call.1} parent=1 // pred_check
      _
    $region3: #{tpu_custom_call.1} parent=1 // pred_check_branch
      %12 = sbr.rel (0) target = $region5
    $region4: #{tpu_custom_call.1} parent=1 // pred_region
      %s14 = ssub.s32 64, 64
      %15 = vsyncadd [#allocation3], %s14
      %s17 = sshll.u32 [#allocation2], 4
      %s18 = int_to_ptr.vmem [resolvable:$true] %s17
      %20 = dma.hbm_to_vmem [thread:$0]  %s0, 64, %s18, [#allocation3]
    $region5: #{tpu_custom_call.1} parent=1 // pred_fallthru
      _
    // Predicated region
    $region6: #{tpu_custom_call.1} parent=1 // pred_check
      _
    $region7: #{tpu_custom_call.1} parent=1 // pred_check_branch
      %22 = sbr.rel (0) target = $region9
    $region8: #{tpu_custom_call.1} parent=1 // pred_region
      %s24 = ssub.s32 1536, 1536
      %25 = vsyncadd [#allocation6], %s24
      %s26 = sshll.u32 [#allocation5], 4
      %s27 = int_to_ptr.vmem [resolvable:$true] %s26
      %32 = dma.hbm_to_vmem [thread:$0]  %s1, 1536, %s27, [#allocation6], 64, 64, 4
    $region9: #{tpu_custom_call.1} parent=1 // pred_fallthru
      _
    // Predicated region
    $region10: #{tpu_custom_call.1} parent=1 // pred_check
      _
    $region11: #{tpu_custom_call.1} parent=1 // pred_check_branch
      %34 = sbr.rel (0) target = $region13
    $region12: #{tpu_custom_call.1} parent=1 // pred_region
      _
    $region13: #{tpu_custom_call.1} parent=1 // pred_fallthru
      _
    // Predicated region
    $region14: #{tpu_custom_call.1} parent=1 // pred_check
      _
    $region15: #{tpu_custom_call.1} parent=1 // pred_check_branch
      %36 = sbr.rel (0) target = $region17
    $region16: #{tpu_custom_call.1} parent=1 // pred_region
      %37 = dma.done [#allocation3], 64
    $region17: #{tpu_custom_call.1} parent=1 // pred_fallthru
      _
    // Predicated region
    $region18: #{tpu_custom_call.1} parent=1 // pred_check
      _
    $region19: #{tpu_custom_call.1} parent=1 // pred_check_branch
      %39 = sbr.rel (0) target = $region21
    $region20: #{tpu_custom_call.1} parent=1 // pred_region
      %40 = dma.done [#allocation6], 1536
    $region21: #{tpu_custom_call.1} parent=1 // pred_fallthru
      _
    %v42 = vld [vmem:[#allocation2] sm:$0xf]
    %v43 = vld [vmem:[#allocation5] sm:$0xf]
    %v44 = vld [vmem:[#allocation5 + $0x4] sm:$0xf]
    %v45 = vld [vmem:[#allocation5 + $0x8] sm:$0xf]
    %v46 = vld [vmem:[#allocation5 + $0xc] sm:$0xf]
    %v47 = vld [vmem:[#allocation5 + $0x10] sm:$0xf]
    %v48 = vld [vmem:[#allocation5 + $0x14] sm:$0xf]
    %v49 = vld [vmem:[#allocation5 + $0x18] sm:$0xf]
    %v50 = vld [vmem:[#allocation5 + $0x1c] sm:$0xf]
    %v51 = vld [vmem:[#allocation5 + $0x20] sm:$0xf]
    %v52 = vld [vmem:[#allocation5 + $0x24] sm:$0xf]
    %v53 = vld [vmem:[#allocation5 + $0x28] sm:$0xf]
    %v54 = vld [vmem:[#allocation5 + $0x2c] sm:$0xf]
    %v55 = vld [vmem:[#allocation5 + $0x30] sm:$0xf]
    %v56 = vld [vmem:[#allocation5 + $0x34] sm:$0xf]
    %v57 = vld [vmem:[#allocation5 + $0x38] sm:$0xf]
    %v58 = vld [vmem:[#allocation5 + $0x3c] sm:$0xf]
    %v59 = vld [vmem:[#allocation5 + $0x40] sm:$0xf]
    %v60 = vld [vmem:[#allocation5 + $0x44] sm:$0xf]
    %v61 = vld [vmem:[#allocation5 + $0x48] sm:$0xf]
    %v62 = vld [vmem:[#allocation5 + $0x4c] sm:$0xf]
    %v63 = vld [vmem:[#allocation5 + $0x50] sm:$0xf]
    %v64 = vld [vmem:[#allocation5 + $0x54] sm:$0xf]
    %v65 = vld [vmem:[#allocation5 + $0x58] sm:$0xf]
    %v66 = vld [vmem:[#allocation5 + $0x5c] sm:$0xf]
    %v67 = vld [vmem:[%s2] sm:$0xf]
    %v70 = vunpack.c.l.s4 1983009808
    %v71 = vunpack.c.0.s8 %v70
    %v72 = vlaneseq
    %v73 = vshrl.u32 %v72, 7
    %v74 = vsub.s32 %v71, %v73
    %v75 = vrot.slane %v42, %v74
    %v76 = vcombine.high %v75, %v75
    %v102 = vunpack.c.l.b16 %v43
    %v103 = vunpack.c.l.b16 %v44
    %v104 = vunpack.c.l.b16 %v45
    %v105 = vunpack.c.l.b16 %v46
    %v106 = vunpack.c.l.b16 %v47
    %v107 = vunpack.c.l.b16 %v48
    %v108 = vunpack.c.l.b16 %v49
    %v109 = vunpack.c.l.b16 %v50
    %v110 = vunpack.c.l.b16 %v51
    %v111 = vunpack.c.l.b16 %v52
    %v112 = vunpack.c.l.b16 %v53
    %v113 = vunpack.c.l.b16 %v54
    %v114 = vunpack.c.l.b16 %v55
    %v115 = vunpack.c.l.b16 %v56
    %v116 = vunpack.c.l.b16 %v57
    %v117 = vunpack.c.l.b16 %v58
    %v118 = vunpack.c.l.b16 %v59
    %v119 = vunpack.c.l.b16 %v60
    %v120 = vunpack.c.l.b16 %v61
    %v121 = vunpack.c.l.b16 %v62
    %v122 = vunpack.c.l.b16 %v63
    %v123 = vunpack.c.l.b16 %v64
    %v124 = vunpack.c.l.b16 %v65
    %v125 = vunpack.c.l.b16 %v66
    %v126 = vpack.c.b16 %v103, %v102
    %v127 = vpack.c.b16 %v105, %v104
    %v128 = vpack.c.b16 %v107, %v106
    %v129 = vpack.c.b16 %v109, %v108
    %v130 = vpack.c.b16 %v111, %v110
    %v131 = vpack.c.b16 %v113, %v112
    %v132 = vpack.c.b16 %v115, %v114
    %v133 = vpack.c.b16 %v117, %v116
    %v134 = vpack.c.b16 %v119, %v118
    %v135 = vpack.c.b16 %v121, %v120
    %v136 = vpack.c.b16 %v123, %v122
    %v137 = vpack.c.b16 %v125, %v124
    %vm150 = vcmask 523264
    %v152 = vsel %vm150, %v76, 0
    %154 = vmatprep.subr.bf16.mxu0 0
    %155 = vmatpush1.bf16.msra.mxu0 %v126
    %156 = vmatprep.subr.bf16.mxu0 0
    %157 = vmatpush1.bf16.msra.mxu0 %v127
    %158 = vmatprep.subr.bf16.mxu0 0
    %159 = vmatpush1.bf16.msra.mxu0 %v128
    %160 = vmatprep.subr.bf16.mxu0 0
    %161 = vmatpush1.bf16.msra.mxu0 %v129
    %162 = vmatprep.subr.bf16.mxu0 0
    %163 = vmatpush1.bf16.msra.mxu0 %v130
    %164 = vmatprep.subr.bf16.mxu0 0
    %165 = vmatpush1.bf16.msra.mxu0 %v131
    %166 = vmatprep.subr.bf16.mxu0 0
    %167 = vmatpush1.bf16.msra.mxu0 %v132
    %168 = vmatprep.subr.bf16.mxu0 0
    %169 = vmatpush1.bf16.msra.mxu0 %v133
    %170 = vmatprep.subr.bf16.mxu0 0
    %171 = vmatpush1.bf16.msra.mxu0 %v134
    %172 = vmatprep.subr.bf16.mxu0 0
    %173 = vmatpush1.bf16.msra.mxu0 %v135
    %174 = vmatprep.subr.bf16.mxu0 0
    %175 = vmatpush1.bf16.msra.mxu0 %v136
    %176 = vmatprep.subr.bf16.mxu0 0
    %177 = vmatpush1.bf16.msra.mxu0 %v137
    %178 = vmatprep.subr.bf16.mxu0 0
    %179 = vmatpush1.bf16.msra.mxu0 0
    %180 = vmatprep.subr.bf16.mxu0 0
    %181 = vmatpush1.bf16.msra.mxu0 0
    %182 = vmatprep.subr.bf16.mxu0 0
    %183 = vmatpush1.bf16.msra.mxu0 0
    %184 = vmatprep.subr.bf16.mxu0 0
    %185 = vmatpush1.bf16.msra.mxu0 0
    %186 = vmatprep.mubr.bf16.mxu0 %v152
    %187 = vmatmul.mubr.bf16.gmra.mrb[0].mxu0 %v75
    %v188 = vpop.f32.mrb[0].mxu0
    %v189 = vadd.f32 %v67, %v188
    %v190 = vpop.f32.mrb[0].mxu0
    %v191 = vpop.f32.mrb[0].mxu0
    %v192 = vpop.f32.mrb[0].mxu0
    %193 = vdwg.mxu0
    %194 = vst [vmem:[#allocation7] sm:$0xf] %v189
    // Predicated region
    $region22: #{tpu_custom_call.1} parent=1 // pred_check
      _
    $region23: #{tpu_custom_call.1} parent=1 // pred_check_branch
      %196 = sbr.rel (0) target = $region25
    $region24: #{tpu_custom_call.1} parent=1 // pred_region
      %s198 = ssub.s32 64, 64
      %199 = vsyncadd [#allocation4], %s198
      %s201 = sshll.u32 [#allocation7], 4
      %s202 = int_to_ptr.vmem [resolvable:$true] %s201
      %204 = dma.vmem_to_hbm [thread:$0]  %s202, 64, %s3, [#allocation4]
    $region25: #{tpu_custom_call.1} parent=1 // pred_fallthru
      _
    // Predicated region
    $region26: #{tpu_custom_call.1} parent=1 // pred_check
      _
    $region27: #{tpu_custom_call.1} parent=1 // pred_check_branch
      %206 = sbr.rel (0) target = $region29
    $region28: #{tpu_custom_call.1} parent=1 // pred_region
      %207 = dma.done [#allocation4], 64
    $region29: #{tpu_custom_call.1} parent=1 // pred_fallthru
      _
    %208 = vsyncpa [#allocation3], 1
    %209 = vsyncpa [#allocation6], 1
    %210 = vsyncpa [#allocation4], 1

</llo_original>
